<compile_context>
chip_gen: v5e
topology: v5e:2x2
jax: 0.10.0
libtpu: 0.0.40
codegen_flags: <defaults>
</compile_context>

<pallas_src>
import jax
import jax.numpy as jnp
from jax.experimental import pallas as pl
from jax.experimental.pallas import tpu as pltpu

_MIB = 1024 * 1024


def _cdiv(a, b):
    return -(-a // b)


def _round_up(v, m):
    return _cdiv(v, m) * m


def _pick_tile(dim, target, multiple):
    """Largest divisor of `dim` that is <= target and a multiple of `multiple`.
    Falls back to the full dim (block == full array dim is always legal)."""
    if dim <= target:
        return dim
    t = (target // multiple) * multiple
    while t >= multiple:
        if dim % t == 0:
            return t
        t -= multiple
    return dim


def _tpu_vmem_capacity_bytes():
    """Physical per-core VMEM; conservative 64 MiB (v7x-safe) fallback."""
    try:
        info = pltpu.get_tpu_info()
        cap = int(getattr(info, "vmem_capacity_bytes", 0))
        if cap > 0:
            return cap
    except Exception:
        pass
    return 64 * _MIB


def _prep_fused_weights(w1, b1, w2, b2, th):
    """Interleave w1/w2 (and b1/b2) per H-tile so each h-slice of the fused
    weight is the contiguous block [w1_h | w2_h] of width 2*th."""
    D, H = w1.shape
    n = H // th
    w12 = jnp.concatenate(
        [w1.reshape(D, n, th), w2.reshape(D, n, th)], axis=2).reshape(D, 2 * H)
    b12 = jnp.concatenate(
        [b1.reshape(1, n, th), b2.reshape(1, n, th)], axis=2).reshape(1, 2 * H)
    return w12, b12


def swiglu_kernel(x_ref, w12_ref, b12_ref, w3_ref, b3_ref, o_ref, acc_ref):
    h = pl.program_id(1)

    @pl.when(h == 0)
    def _init():
        acc_ref[...] = jnp.zeros_like(acc_ref)

    th = w3_ref.shape[0]
    x = x_ref[...]

    # Fused up-projection: one MXU pass produces [x1 | x2] for this H-slice.
    x12 = jnp.dot(x, w12_ref[...], preferred_element_type=jnp.float32)
    x12 = x12 + b12_ref[...].astype(jnp.float32)
    x1 = x12[:, :th]
    x2 = x12[:, th:]

    # SiLU(x1) * x2 (sigmoid -> EUP slot, multiplies -> VPU).
    hidden = (x1 * jax.nn.sigmoid(x1)) * x2
    # TODO(synk): subln=True would need a LayerNorm over the *full* hidden axis
    # (different reduction structure); default subln=False -> Identity.

    # Partial contribution of this H-slice to the down-projection.
    acc_ref[...] += jnp.dot(hidden.astype(w3_ref.dtype), w3_ref[...],
                            preferred_element_type=jnp.float32)

    @pl.when(h == pl.num_programs(1) - 1)
    def _finalize():
        # b3 added once; Dropout(p=0.0) is identity.
        o_ref[...] = (acc_ref[...] + b3_ref[...].astype(jnp.float32)
                      ).astype(o_ref.dtype)


def swiglu_pallas(x, w1, b1, w2, b2, w3, b3, *, tm=None, th=None,
                  weight_resident=None):
    """x: (B, N, D).  w1, w2: (D, H), b1, b2: (1, H).  w3: (H, O), b3: (1, O)."""
    B, N, D = x.shape
    H = w1.shape[1]
    O = w3.shape[1]
    M = B * N
    isz = lambda a: jnp.dtype(a.dtype).itemsize

    # ---- per-chip budgets --------------------------------------------------
    vmem_cap = _tpu_vmem_capacity_bytes()
    # Headroom for Mosaic's own scratch: ~48 MiB usable on v7x (64 MiB / TC),
    # ~112 MiB on v5e / v6e (128 MiB physical).
    vmem_budget = max(vmem_cap - 16 * _MIB, 32 * _MIB)
    small_vmem = vmem_cap < 100 * _MIB          # v7x-class part (2 TCs, 64 MiB)

    sub = 16 if x.dtype == jnp.bfloat16 else 8  # sublane packing of the M axis

    def vmem_est(tm_, th_, single_buffer_weights):
        wbuf = 1 if single_buffer_weights else 2
        weights = wbuf * ((D * 2 * th_ + 2 * th_) * isz(w1)
                          + (th_ * O + O) * isz(w3))
        streams = 2 * tm_ * D * isz(x) + 2 * tm_ * O * isz(x)  # x / out tiles
        acc = tm_ * O * 4                                      # f32 accumulator
        interm = 4 * tm_ * th_ * 4                             # x12 / hidden f32 temps
        return weights + streams + acc + interm

    # ---- weight residency (v5e / v6e): W1|W2 and W3 live in VMEM once -------
    if weight_resident is None:
        tm_probe = min(512, _round_up(M, sub))
        weight_resident = (th is None
                           and vmem_est(tm_probe, H, True) <= vmem_budget)

    # ---- hidden-dim tile -----------------------------------------------------
    if th is None:
        if weight_resident:
            th = H                               # single h step; weights DMA'd once
        else:
            th = _pick_tile(H, 1024, 256)        # 2x256x256 MXU friendly
            if th == H and H > 2048:
                th = _pick_tile(H, 1024, 128)    # fall back to 128-multiples
    assert H % th == 0, "th must divide hidden_features"

    # ---- M (token) tile ------------------------------------------------------
    if tm is None:
        # Streaming mode re-reads the weight slices once per M tile, so tm sets
        # the arithmetic intensity against the weight stream: push it toward
        # the MXU roofline (~1024 rows on 128 MiB parts, ~512 on v7x).  In
        # resident mode tm only needs to amortize per-step overhead.
        tm = 512 if (weight_resident or small_vmem) else 1024
        tm = min(tm, _round_up(M, sub))
        if tm >= 256:
            tm = max(256, (tm // 256) * 256)     # MXU-friendly 256 multiples
        if small_vmem and M > 2 * sub:
            # v7x: keep >= 2 tiles on the parallel M axis so both TCs get work.
            tm = min(tm, max(sub, _round_up(_cdiv(M, 2), sub)))
        while tm > sub and vmem_est(tm, th, weight_resident) > vmem_budget:
            tm = _round_up(tm // 2, sub)
    tm = _round_up(max(tm, sub), sub)

    # ---- data prep -----------------------------------------------------------
    M_pad = _round_up(M, tm)
    x2d = x.reshape(M, D)
    if M_pad != M:
        x2d = jnp.pad(x2d, ((0, M_pad - M), (0, 0)))
    w12, b12 = _prep_fused_weights(w1, b1, w2, b2, th)

    grid = (M_pad // tm, H // th)

    def _call(single_buffer_weights):
        def wspec(shape, index_map):
            if single_buffer_weights:
                # Constant block index across the grid -> one DMA; keep a
                # single VMEM buffer instead of a useless double buffer.
                return pl.BlockSpec(shape, index_map,
                                    pipeline_mode=pl.Buffered(1))
            return pl.BlockSpec(shape, index_map)

        est = vmem_est(tm, th, single_buffer_weights)
        vmem_limit = int(min(max(int(est * 1.25), 32 * _MIB), vmem_budget))

        return pl.pallas_call(
            swiglu_kernel,
            out_shape=jax.ShapeDtypeStruct((M_pad, O), x.dtype),
            grid_spec=pltpu.PrefetchScalarGridSpec(
                num_scalar_prefetch=0,
                grid=grid,
                in_specs=[
                    pl.BlockSpec((tm, D), lambda i, h: (i, 0)),   # x tile
                    wspec((D, 2 * th), lambda i, h: (0, h)),      # [w1_h | w2_h]
                    wspec((1, 2 * th), lambda i, h: (0, h)),      # [b1_h | b2_h]
                    wspec((th, O), lambda i, h: (h, 0)),          # w3 H-slice
                    wspec((1, O), lambda i, h: (0, 0)),           # b3 (constant)
                ],
                out_specs=pl.BlockSpec((tm, O), lambda i, h: (i, 0)),
                scratch_shapes=[pltpu.VMEM((tm, O), jnp.float32)],
            ),
            compiler_params=pltpu.CompilerParams(
                dimension_semantics=("parallel", "arbitrary"),
                vmem_limit_bytes=vmem_limit,
            ),
        )(x2d, w12, b12, w3, b3)

    if weight_resident:
        try:
            out2d = _call(True)
        except Exception:
            # Fallback for jax versions without single-buffer pipeline_mode.
            # Weights are still DMA'd only once (constant block index); this
            # just costs an extra (idle) VMEM buffer per weight.
            out2d = _call(False)
    else:
        out2d = _call(False)

    if M_pad != M:
        out2d = out2d[:M]
    return out2d.reshape(B, N, O)


def swiglu_reference(x, w1, b1, w2, b2, w3, b3):
    x1 = x @ w1 + b1[0]
    x2 = x @ w2 + b2[0]
    hidden = (x1 * jax.nn.sigmoid(x1)) * x2
    return hidden @ w3 + b3[0]


if __name__ == "__main__":
    # Small shapes: batch=2, seq=25 (deliberately non-tile-aligned),
    # in_features=32, hidden_features=256, out_features=in_features.
    B, N, D, H = 2, 25, 32, 256
    O = D

    key = jax.random.PRNGKey(0)
    kx, k1, k2, k3, kb1, kb2, kb3 = jax.random.split(key, 7)

    x = jax.random.normal(kx, (B, N, D), dtype=jnp.float32)
    w1 = jax.random.normal(k1, (D, H), dtype=jnp.float32) * (1.0 / D ** 0.5)
    w2 = jax.random.normal(k2, (D, H), dtype=jnp.float32) * (1.0 / D ** 0.5)
    w3 = jax.random.normal(k3, (H, O), dtype=jnp.float32) * (1.0 / H ** 0.5)
    b1 = jax.random.normal(kb1, (1, H), dtype=jnp.float32) * 0.01
    b2 = jax.random.normal(kb2, (1, H), dtype=jnp.float32) * 0.01
    b3 = jax.random.normal(kb3, (1, O), dtype=jnp.float32) * 0.01

    ref = swiglu_reference(x, w1, b1, w2, b2, w3, b3)

    # (a) Streaming path: small explicit tiles exercise the 2-D (M, H) grid,
    #     the f32 accumulator finalize, the fused w1|w2 interleave and the
    #     M-padding path.
    out_stream = swiglu_pallas(x, w1, b1, w2, b2, w3, b3,
                               tm=16, th=128, weight_resident=False)
    out_stream = jax.block_until_ready(out_stream)
    assert out_stream.shape == (B, N, O), out_stream.shape
    assert jnp.allclose(out_stream, ref, atol=1e-4, rtol=1e-4), \
        "streaming-path mismatch vs reference"

    # (b) Auto path: generation-aware tiles; the tiny weights fit VMEM so this
    #     exercises the weight-resident (th=H, single-buffered weights) mode.
    out_auto = swiglu_pallas(x, w1, b1, w2, b2, w3, b3)
    out_auto = jax.block_until_ready(out_auto)
    assert out_auto.shape == (B, N, O), out_auto.shape
    assert jnp.allclose(out_auto, ref, atol=1e-4, rtol=1e-4), \
        "auto-path mismatch vs reference"

    print("KERNEL_OK")
</pallas_src>

<mosaic_0001>
module attributes {stable_mosaic.version = 11 : i64} {
  func.func @swiglu_kernel(%arg0: i32, %arg1: i32, %arg2: memref<16x32xf32, #tpu.memory_space<vmem>>, %arg3: memref<32x256xf32, #tpu.memory_space<vmem>>, %arg4: memref<1x256xf32, #tpu.memory_space<vmem>>, %arg5: memref<128x32xf32, #tpu.memory_space<vmem>>, %arg6: memref<1x32xf32, #tpu.memory_space<vmem>>, %arg7: memref<16x32xf32, #tpu.memory_space<vmem>>, %arg8: memref<16x32xf32, #tpu.memory_space<vmem>>) attributes {dimension_semantics = [#tpu.dimension_semantics<parallel>, #tpu.dimension_semantics<arbitrary>], iteration_bounds = array<i64: 4, 2>, scalar_prefetch = 0 : i64, scratch_operands = 1 : i64, tpu.core_type = #tpu.core_type<tc>, window_params = [{transform_indices = @transform_0, window_bounds = array<i64: 16, 32>}, {transform_indices = @transform_1, window_bounds = array<i64: 32, 256>}, {transform_indices = @transform_2, window_bounds = array<i64: 1, 256>}, {transform_indices = @transform_3, window_bounds = array<i64: 128, 32>}, {pipeline_mode = #tpu.pipeline_mode<synchronous>, transform_indices = @transform_4, window_bounds = array<i64: 1, 32>}, {transform_indices = @transform_5, window_bounds = array<i64: 16, 32>}]} {
    %c0_i32 = arith.constant 0 : i32
    %0 = arith.cmpi eq, %arg1, %c0_i32 : i32
    %1 = arith.extui %0 : i1 to i32
    %c0_i32_0 = arith.constant 0 : i32
    %2 = arith.cmpi ne, %1, %c0_i32_0 : i32
    scf.if %2 {
      %cst_15 = arith.constant 0.000000e+00 : f32
      %26 = vector.broadcast %cst_15 : f32 to vector<16x32xf32>
      %c0_16 = arith.constant 0 : index
      %c0_17 = arith.constant 0 : index
      %27 = vector.load %arg8[%c0_16, %c0_17] : memref<16x32xf32, #tpu.memory_space<vmem>>, vector<16x32xf32>
      tpu.vector_store %arg8[%c0_16, %c0_17], %26 {strides = array<i32>} : memref<16x32xf32, #tpu.memory_space<vmem>>, vector<16x32xf32>,
    } else {
    }
    %c0 = arith.constant 0 : index
    %c0_1 = arith.constant 0 : index
    %3 = vector.load %arg2[%c0, %c0_1] : memref<16x32xf32, #tpu.memory_space<vmem>>, vector<16x32xf32>
    %c0_2 = arith.constant 0 : index
    %c0_3 = arith.constant 0 : index
    %4 = vector.load %arg3[%c0_2, %c0_3] : memref<32x256xf32, #tpu.memory_space<vmem>>, vector<32x256xf32>
    %cst = arith.constant dense<0.000000e+00> : vector<16x256xf32>
    %5 = tpu.matmul %3, %4, %cst {dimension_numbers = #tpu.dot_dimension_numbers<[1], [0], [0], [1], [0, 0, 1, 1], [], []>} : vector<16x32xf32>, vector<32x256xf32>, vector<16x256xf32> -> vector<16x256xf32>
    %c0_4 = arith.constant 0 : index
    %c0_5 = arith.constant 0 : index
    %6 = vector.load %arg4[%c0_4, %c0_5] : memref<1x256xf32, #tpu.memory_space<vmem>>, vector<1x256xf32>
    %7 = vector.broadcast %6 : vector<1x256xf32> to vector<16x256xf32>
    %8 = arith.addf %5, %7 : vector<16x256xf32>
    %9 = vector.extract_strided_slice %8 {offsets = [0, 0], sizes = [16, 128], strides = [1, 1]} : vector<16x256xf32> to vector<16x128xf32>
    %10 = vector.extract_strided_slice %8 {offsets = [0, 128], sizes = [16, 128], strides = [1, 1]} : vector<16x256xf32> to vector<16x128xf32>
    %11 = arith.negf %9 : vector<16x128xf32>
    %12 = math.exp %11 : vector<16x128xf32>
    %cst_6 = arith.constant 1.000000e+00 : f32
    %13 = vector.broadcast %cst_6 : f32 to vector<16x128xf32>
    %14 = arith.addf %13, %12 : vector<16x128xf32>
    %15 = arith.divf %13, %14 : vector<16x128xf32>
    %16 = arith.mulf %9, %15 : vector<16x128xf32>
    %17 = arith.mulf %16, %10 : vector<16x128xf32>
    %c0_7 = arith.constant 0 : index
    %c0_8 = arith.constant 0 : index
    %18 = vector.load %arg8[%c0_7, %c0_8] : memref<16x32xf32, #tpu.memory_space<vmem>>, vector<16x32xf32>
    %c0_9 = arith.constant 0 : index
    %c0_10 = arith.constant 0 : index
    %19 = vector.load %arg5[%c0_9, %c0_10] : memref<128x32xf32, #tpu.memory_space<vmem>>, vector<128x32xf32>
    %cst_11 = arith.constant dense<0.000000e+00> : vector<16x32xf32>
    %20 = tpu.matmul %17, %19, %cst_11 {dimension_numbers = #tpu.dot_dimension_numbers<[1], [0], [0], [1], [0, 0, 1, 1], [], []>} : vector<16x128xf32>, vector<128x32xf32>, vector<16x32xf32> -> vector<16x32xf32>
    %21 = arith.addf %18, %20 : vector<16x32xf32>
    %c0_12 = arith.constant 0 : index
    %c0_13 = arith.constant 0 : index
    %22 = vector.load %arg8[%c0_12, %c0_13] : memref<16x32xf32, #tpu.memory_space<vmem>>, vector<16x32xf32>
    tpu.vector_store %arg8[%c0_12, %c0_13], %21 {strides = array<i32>} : memref<16x32xf32, #tpu.memory_space<vmem>>, vector<16x32xf32>,
    %c1_i32 = arith.constant 1 : i32
    %23 = arith.cmpi eq, %arg1, %c1_i32 : i32
    %24 = arith.extui %23 : i1 to i32
    %c0_i32_14 = arith.constant 0 : i32
    %25 = arith.cmpi ne, %24, %c0_i32_14 : i32
    scf.if %25 {
      %c0_15 = arith.constant 0 : index
      %c0_16 = arith.constant 0 : index
      %26 = vector.load %arg8[%c0_15, %c0_16] : memref<16x32xf32, #tpu.memory_space<vmem>>, vector<16x32xf32>
      %c0_17 = arith.constant 0 : index
      %c0_18 = arith.constant 0 : index
      %27 = vector.load %arg6[%c0_17, %c0_18] : memref<1x32xf32, #tpu.memory_space<vmem>>, vector<1x32xf32>
      %28 = vector.broadcast %27 : vector<1x32xf32> to vector<16x32xf32>
      %29 = arith.addf %26, %28 : vector<16x32xf32>
      %c0_19 = arith.constant 0 : index
      %c0_20 = arith.constant 0 : index
      %30 = vector.load %arg7[%c0_19, %c0_20] : memref<16x32xf32, #tpu.memory_space<vmem>>, vector<16x32xf32>
      tpu.vector_store %arg7[%c0_19, %c0_20], %29 {strides = array<i32>} : memref<16x32xf32, #tpu.memory_space<vmem>>, vector<16x32xf32>,
    } else {
    }
    return
  }
  func.func @transform_0(%arg0: i32, %arg1: i32) -> (i32, i32) {
    %c0_i32 = arith.constant 0 : i32
    %c0_i32_0 = arith.constant 0 : i32
    return %arg0, %c0_i32 : i32, i32
  }
  func.func @transform_1(%arg0: i32, %arg1: i32) -> (i32, i32) {
    %c0_i32 = arith.constant 0 : i32
    %c0_i32_0 = arith.constant 0 : i32
    return %c0_i32, %arg1 : i32, i32
  }
  func.func @transform_2(%arg0: i32, %arg1: i32) -> (i32, i32) {
    %c0_i32 = arith.constant 0 : i32
    %c0_i32_0 = arith.constant 0 : i32
    return %c0_i32, %arg1 : i32, i32
  }
  func.func @transform_3(%arg0: i32, %arg1: i32) -> (i32, i32) {
    %c0_i32 = arith.constant 0 : i32
    %c0_i32_0 = arith.constant 0 : i32
    return %arg1, %c0_i32 : i32, i32
  }
  func.func @transform_4(%arg0: i32, %arg1: i32) -> (i32, i32) {
    %c0_i32 = arith.constant 0 : i32
    %c0_i32_0 = arith.constant 0 : i32
    %c0_i32_1 = arith.constant 0 : i32
    return %c0_i32, %c0_i32_0 : i32, i32
  }
  func.func @transform_5(%arg0: i32, %arg1: i32) -> (i32, i32) {
    %c0_i32 = arith.constant 0 : i32
    %c0_i32_0 = arith.constant 0 : i32
    return %arg0, %c0_i32 : i32, i32
  }
}

</mosaic_0001>

<llo_original>
// kernel: tpu_custom_call.1
$region0: #{tpu_custom_call.1}
  #allocation0 [shape = 'u32[]', space=smem, size = 0x4, offset = 0x4, fixed_abs, tag = 'smem constant byte address 0x4 - core index']
  #allocation1 [shape = 'u32[72,128]{1,0:T(1,128)}', space=vmem, size = 0x9000, scoped, tag = 'internal scratch']
  #allocation2 [shape = 'f32[16,32]{1,0:T(8,128)}', space=vmem, size = 0x2000, scoped, tag = 'scratch operand']
  %s0 = inlined_call_operand.vmem [shape: f32[64,32], index: 0, kind: input, shape index: {}]
  %s1 = inlined_call_operand.vmem [shape: f32[32,512], index: 1, kind: input, shape index: {}]
  %s2 = inlined_call_operand.vmem [shape: f32[1,512], index: 2, kind: input, shape index: {}]
  %s3 = inlined_call_operand.vmem [shape: f32[256,32], index: 3, kind: input, shape index: {}]
  %s4 = inlined_call_operand.vmem [shape: f32[1,32], index: 4, kind: input, shape index: {}]
  %s5 = inlined_call_operand.vmem [shape: f32[64,32], index: 5, kind: output, shape index: {}]
  %s6 = sld [smem:[#allocation0]]
  $region84: #{tpu_custom_call.1} parent=0
    _
  %s8 = ssub.s32 1, %s6
  %s9 = scalar_select 0, %s8, %s6
  $region1: #{tpu_custom_call.1} parent=0
    #allocation3 [shape = 'u8[65536]{0}', space=vmem, size = 0x10000, scoped, tag = 'input window, operand 1']
    loop: start=0, step=1, limit=10
    $region2: #{tpu_custom_call.1} parent=1 // loop_pre_header
      _
    $region3: #{tpu_custom_call.1} parent=1 // loop_header
      %s11 = sphi 0, %s15
      %p12 = scmp.ge.s32.totalorder %s11, 10
      %s18 = sphi 0, %s30
      %s19 = sphi 0, %s26
      %s20 = sphi 0, %s18
      %s21 = sphi 0, %s19
      %s22 = sphi 0, %s20
      %s23 = sphi 0, %s21
      %s33 = sphi 0, %s35
      %s36 = sphi 0, %s33
      %s37 = sphi 0, %s36
      %s53 = sphi 0, %s37
      %s59 = sphi 0, %s61
      %s62 = sphi 0, %s59
      %s63 = sphi 0, %s62
      %s79 = sphi 0, %s63
      %s85 = sphi 0, %s87
      %s88 = sphi 0, %s85
      %s89 = sphi 0, %s88
      %s105 = sphi 0, %s89
      %s111 = sphi 0, %s113
      %s114 = sphi 0, %s111
      %s115 = sphi 0, %s114
      %s131 = sphi 0, %s115
      %s135 = sphi 0, %s135
      %s137 = sphi 0, %s135
      %s138 = sphi 0, %s137
      %s152 = sphi 0, %s138
      %s158 = sphi 0, %s160
      %s161 = sphi 0, %s158
      %s162 = sphi 0, %s161
      %s178 = sphi 0, %s162
    $region4: #{tpu_custom_call.1} parent=1 // loop_header_branch
      %14 = sbr.rel (%p12) target = $region8
    $region5: #{tpu_custom_call.1} parent=1 // loop_body
      %s16 = ssub.s32 %s11, 1
      %s17 = ssub.s32 %s11, 2
      %s24 = sadd.s32 1, %s19
      %p25 = scmp.ge.s32.totalorder %s24, 2
      %s26 = scalar_select %p25, 0, %s24
      %s27 = sadd.s32 1, %s18
      %s28 = scalar_select %p25, %s27, %s18
      %p29 = scmp.ge.s32.totalorder %s28, 4
      %s30 = scalar_select %p29, 0, %s28
      %s31 = ssub.s32 %s18, %s30
      %p32 = scmp.eq.s32.totalorder %s31, 0
      %s34 = sadd.s32 %s33, 1
      %s35 = scalar_select %p32, %s33, %s34
      %p38 = pneg %p32
      %p39 = scmp.eq.s32.totalorder %s11, 7
      %p40 = por %p38, %p39
      %p41 = scmp.ne.s32.totalorder %s33, %s36
      %p42 = scmp.eq.s32.totalorder %s11, 0
      %p43 = por %p41, %p42
      %p44 = scmp.ne.s32.totalorder %s33, %s36
      %p45 = scmp.eq.s32.totalorder %s16, 7
      %p46 = por %p44, %p45
      %p47 = scmp.ne.s32.totalorder %s36, %s37
      %p48 = scmp.eq.s32.totalorder %s16, 0
      %p49 = por %p47, %p48
      %p50 = scmp.ne.s32.totalorder %s36, %s37
      %p51 = scmp.eq.s32.totalorder %s17, 7
      %p52 = por %p50, %p51
      %p54 = scmp.ne.s32.totalorder %s37, %s53
      %p55 = scmp.eq.s32.totalorder %s17, 0
      %p56 = por %p54, %p55
      %s57 = ssub.s32 %s19, %s26
      %p58 = scmp.eq.s32.totalorder %s57, 0
      %s60 = sadd.s32 %s59, 1
      %s61 = scalar_select %p58, %s59, %s60
      %p64 = pneg %p58
      %p65 = scmp.eq.s32.totalorder %s11, 7
      %p66 = por %p64, %p65
      %p67 = scmp.ne.s32.totalorder %s59, %s62
      %p68 = scmp.eq.s32.totalorder %s11, 0
      %p69 = por %p67, %p68
      %p70 = scmp.ne.s32.totalorder %s59, %s62
      %p71 = scmp.eq.s32.totalorder %s16, 7
      %p72 = por %p70, %p71
      %p73 = scmp.ne.s32.totalorder %s62, %s63
      %p74 = scmp.eq.s32.totalorder %s16, 0
      %p75 = por %p73, %p74
      %p76 = scmp.ne.s32.totalorder %s62, %s63
      %p77 = scmp.eq.s32.totalorder %s17, 7
      %p78 = por %p76, %p77
      %p80 = scmp.ne.s32.totalorder %s63, %s79
      %p81 = scmp.eq.s32.totalorder %s17, 0
      %p82 = por %p80, %p81
      %s83 = ssub.s32 %s19, %s26
      %p84 = scmp.eq.s32.totalorder %s83, 0
      %s86 = sadd.s32 %s85, 1
      %s87 = scalar_select %p84, %s85, %s86
      %p90 = pneg %p84
      %p91 = scmp.eq.s32.totalorder %s11, 7
      %p92 = por %p90, %p91
      %p93 = scmp.ne.s32.totalorder %s85, %s88
      %p94 = scmp.eq.s32.totalorder %s11, 0
      %p95 = por %p93, %p94
      %p96 = scmp.ne.s32.totalorder %s85, %s88
      %p97 = scmp.eq.s32.totalorder %s16, 7
      %p98 = por %p96, %p97
      %p99 = scmp.ne.s32.totalorder %s88, %s89
      %p100 = scmp.eq.s32.totalorder %s16, 0
      %p101 = por %p99, %p100
      %p102 = scmp.ne.s32.totalorder %s88, %s89
      %p103 = scmp.eq.s32.totalorder %s17, 7
      %p104 = por %p102, %p103
      %p106 = scmp.ne.s32.totalorder %s89, %s105
      %p107 = scmp.eq.s32.totalorder %s17, 0
      %p108 = por %p106, %p107
      %s109 = ssub.s32 %s19, %s26
      %p110 = scmp.eq.s32.totalorder %s109, 0
      %s112 = sadd.s32 %s111, 1
      %s113 = scalar_select %p110, %s111, %s112
      %p116 = pneg %p110
      %p117 = scmp.eq.s32.totalorder %s11, 7
      %p118 = por %p116, %p117
      %p119 = scmp.ne.s32.totalorder %s111, %s114
      %p120 = scmp.eq.s32.totalorder %s11, 0
      %p121 = por %p119, %p120
      %p122 = scmp.ne.s32.totalorder %s111, %s114
      %p123 = scmp.eq.s32.totalorder %s16, 7
      %p124 = por %p122, %p123
      %p125 = scmp.ne.s32.totalorder %s114, %s115
      %p126 = scmp.eq.s32.totalorder %s16, 0
      %p127 = por %p125, %p126
      %p128 = scmp.ne.s32.totalorder %s114, %s115
      %p129 = scmp.eq.s32.totalorder %s17, 7
      %p130 = por %p128, %p129
      %p132 = scmp.ne.s32.totalorder %s115, %s131
      %p133 = scmp.eq.s32.totalorder %s17, 0
      %p134 = por %p132, %p133
      %s136 = sadd.s32 %s135, 1
      %p139 = scmp.eq.s32.totalorder %s11, 7
      %p140 = scmp.ne.s32.totalorder %s135, %s137
      %p141 = scmp.eq.s32.totalorder %s11, 0
      %p142 = por %p140, %p141
      %p143 = scmp.ne.s32.totalorder %s135, %s137
      %p144 = scmp.eq.s32.totalorder %s16, 7
      %p145 = por %p143, %p144
      %p146 = scmp.ne.s32.totalorder %s137, %s138
      %p147 = scmp.eq.s32.totalorder %s16, 0
      %p148 = por %p146, %p147
      %p149 = scmp.ne.s32.totalorder %s137, %s138
      %p150 = scmp.eq.s32.totalorder %s17, 7
      %p151 = por %p149, %p150
      %p153 = scmp.ne.s32.totalorder %s138, %s152
      %p154 = scmp.eq.s32.totalorder %s17, 0
      %p155 = por %p153, %p154
      %s156 = ssub.s32 %s18, %s30
      %p157 = scmp.eq.s32.totalorder %s156, 0
      %s159 = sadd.s32 %s158, 1
      %s160 = scalar_select %p157, %s158, %s159
      %p163 = pneg %p157
      %p164 = scmp.eq.s32.totalorder %s11, 7
      %p165 = por %p163, %p164
      %p166 = scmp.ne.s32.totalorder %s158, %s161
      %p167 = scmp.eq.s32.totalorder %s11, 0
      %p168 = por %p166, %p167
      %p169 = scmp.ne.s32.totalorder %s158, %s161
      %p170 = scmp.eq.s32.totalorder %s16, 7
      %p171 = por %p169, %p170
      %p172 = scmp.ne.s32.totalorder %s161, %s162
      %p173 = scmp.eq.s32.totalorder %s16, 0
      %p174 = por %p172, %p173
      %p175 = scmp.ne.s32.totalorder %s161, %s162
      %p176 = scmp.eq.s32.totalorder %s17, 7
      %p177 = por %p175, %p176
      %p179 = scmp.ne.s32.totalorder %s162, %s178
      %p180 = scmp.eq.s32.totalorder %s17, 0
      %p181 = por %p179, %p180
      %p182 = scmp.le.s32.totalorder 1, %s11
      %p183 = scmp.lt.s32.totalorder %s11, 9
      %p184 = pnand %p182, %p183
      %p185 = pneg %p184
      // Predicated region
      $region9: #{tpu_custom_call.1} parent=5 // pred_check
        _
      $region10: #{tpu_custom_call.1} parent=5 // pred_check_branch
        %187 = sbr.rel (%p184) target = $region12
      $region11: #{tpu_custom_call.1} parent=5 // pred_region
        %s188 = ssub.s32 %s11, 1
        // Predicated region
        $region13: #{tpu_custom_call.1} parent=11 // pred_check
          %p189 = pneg %p148
        $region14: #{tpu_custom_call.1} parent=11 // pred_check_branch
          %191 = sbr.rel (%p189) target = $region16
        $region15: #{tpu_custom_call.1} parent=11 // pred_region
          _
        $region16: #{tpu_custom_call.1} parent=11 // pred_fallthru
          _
      $region12: #{tpu_custom_call.1} parent=5 // pred_fallthru
        _
      %p192 = scmp.lt.s32.totalorder %s11, 8
      // Predicated region
      $region17: #{tpu_custom_call.1} parent=5 // pred_check
        %p193 = pneg %p192
      $region18: #{tpu_custom_call.1} parent=5 // pred_check_branch
        %195 = sbr.rel (%p193) target = $region20
      $region19: #{tpu_custom_call.1} parent=5 // pred_region
        // Predicated region
        $region21: #{tpu_custom_call.1} parent=19 // pred_check
          %p196 = pneg %p43
        $region22: #{tpu_custom_call.1} parent=19 // pred_check_branch
          %198 = sbr.rel (%p196) target = $region24
        $region23: #{tpu_custom_call.1} parent=19 // pred_region
          %s199 = smul.u32 2, %s18
          %p200 = scmp.lt.s32.totalorder %s199, 7
          %s201 = scalar_select %p200, %s199, 7
          %s202 = smul.addr %s201, 8
          %s203 = scalar_lea.vmem %s0, %s202
          %s204 = smul.u32 2, %s18
        $region24: #{tpu_custom_call.1} parent=19 // pred_fallthru
          _
        // Predicated region
        $region25: #{tpu_custom_call.1} parent=19 // pred_check
          %p205 = pneg %p69
        $region26: #{tpu_custom_call.1} parent=19 // pred_check_branch
          %207 = sbr.rel (%p205) target = $region28
        $region27: #{tpu_custom_call.1} parent=19 // pred_region
          %s208 = sand.u32 %s59, 1
          %s209 = sand.u32 %s59, 1
          %s210 = smul.addr %s209, 64
          %s211 = scalar_lea.vmem [#allocation3], %s210
          %s212 = smul.u32 2, %s19
          %s213 = smul.addr %s212, 8
          %s214 = scalar_lea.vmem %s1, %s213
          // Predicated region
          $region29: #{tpu_custom_call.1} parent=27 // pred_check
            _
          $region30: #{tpu_custom_call.1} parent=27 // pred_check_branch
            %216 = sbr.rel (0) target = $region32
          $region31: #{tpu_custom_call.1} parent=27 // pred_region
            // Predicated region
            $region33: #{tpu_custom_call.1} parent=31 // pred_check
              _
            $region34: #{tpu_custom_call.1} parent=31 // pred_check_branch
              %218 = sbr.rel (0) target = $region36
            $region35: #{tpu_custom_call.1} parent=31 // pred_region
              loop: start=0, step=1, limit=1
              $region37: #{tpu_custom_call.1} parent=35 // loop_pre_header
                _
              $region38: #{tpu_custom_call.1} parent=35 // loop_header
                %s220 = sphi 0, %s224
                %p221 = scmp.ge.s32.totalorder %s220, 1
                %s225 = sphi %s214, %s214
                %s226 = sphi %s211, %s211
              $region39: #{tpu_custom_call.1} parent=35 // loop_header_branch
                %223 = sbr.rel (%p221) target = $region43
              $region40: #{tpu_custom_call.1} parent=35 // loop_body
                %v227 = vld [vmem:[%s225] sm:$0xff]
                %228 = vst [vmem:[%s226] sm:$0xff] %v227
                %v229 = vld [vmem:[%s225 + $0x8] sm:$0xff]
                %230 = vst [vmem:[%s226 + $0x8] sm:$0xff] %v229
                %v231 = vld [vmem:[%s225 + $0x20] sm:$0xff]
                %232 = vst [vmem:[%s226 + $0x10] sm:$0xff] %v231
                %v233 = vld [vmem:[%s225 + $0x28] sm:$0xff]
                %234 = vst [vmem:[%s226 + $0x18] sm:$0xff] %v233
                %v235 = vld [vmem:[%s225 + $0x40] sm:$0xff]
                %236 = vst [vmem:[%s226 + $0x20] sm:$0xff] %v235
                %v237 = vld [vmem:[%s225 + $0x48] sm:$0xff]
                %238 = vst [vmem:[%s226 + $0x28] sm:$0xff] %v237
                %v239 = vld [vmem:[%s225 + $0x60] sm:$0xff]
                %240 = vst [vmem:[%s226 + $0x30] sm:$0xff] %v239
                %v241 = vld [vmem:[%s225 + $0x68] sm:$0xff]
                %242 = vst [vmem:[%s226 + $0x38] sm:$0xff] %v241
              $region41: #{tpu_custom_call.1} parent=35 // loop_footer
                %s224 = sadd.s32 1, %s220
              $region42: #{tpu_custom_call.1} parent=35 // loop_footer_branch
                %219 = sbr.rel target = $region38
              $region43: #{tpu_custom_call.1} parent=35 // loop_exit
                _
            $region36: #{tpu_custom_call.1} parent=31 // pred_fallthru
              _
            // Predicated region
            $region44: #{tpu_custom_call.1} parent=31 // pred_check
              _
            $region45: #{tpu_custom_call.1} parent=31 // pred_check_branch
              %244 = sbr.rel target = $region47
            $region46: #{tpu_custom_call.1} parent=31 // pred_region
              _
            $region47: #{tpu_custom_call.1} parent=31 // pred_fallthru
              _
          $region32: #{tpu_custom_call.1} parent=27 // pred_fallthru
            _
          %245 = vnop
        $region28: #{tpu_custom_call.1} parent=19 // pred_fallthru
          _
        // Predicated region
        $region48: #{tpu_custom_call.1} parent=19 // pred_check
          %p246 = pneg %p95
        $region49: #{tpu_custom_call.1} parent=19 // pred_check_branch
          %248 = sbr.rel (%p246) target = $region51
        $region50: #{tpu_custom_call.1} parent=19 // pred_region
          %s249 = smul.u32 2, %s19
          %p250 = scmp.lt.s32.totalorder %s249, 3
          %s251 = scalar_select %p250, %s249, 3
          %s252 = scalar_lea.vmem %s2, %s251
          %s253 = smul.u32 2, %s19
        $region51: #{tpu_custom_call.1} parent=19 // pred_fallthru
          _
        // Predicated region
        $region52: #{tpu_custom_call.1} parent=19 // pred_check
          %p254 = pneg %p121
        $region53: #{tpu_custom_call.1} parent=19 // pred_check_branch
          %256 = sbr.rel (%p254) target = $region55
        $region54: #{tpu_custom_call.1} parent=19 // pred_region
          %s257 = smul.u32 16, %s19
          %p258 = scmp.lt.s32.totalorder %s257, 31
          %s259 = scalar_select %p258, %s257, 31
          %s260 = smul.addr %s259, 8
          %s261 = scalar_lea.vmem %s3, %s260
          %s262 = smul.u32 16, %s19
        $region55: #{tpu_custom_call.1} parent=19 // pred_fallthru
          _
      $region20: #{tpu_custom_call.1} parent=5 // pred_fallthru
        _
      %p263 = scmp.le.s32.totalorder 1, %s11
      %p264 = scmp.lt.s32.totalorder %s11, 9
      %p265 = pnand %p263, %p264
      %p266 = pneg %p265
      // Predicated region
      $region56: #{tpu_custom_call.1} parent=5 // pred_check
        _
      $region57: #{tpu_custom_call.1} parent=5 // pred_check_branch
        %268 = sbr.rel (%p265) target = $region59
      $region58: #{tpu_custom_call.1} parent=5 // pred_region
        %s269 = ssub.s32 %s11, 1
        %s270 = sand.u32 %s62, 1
        %s271 = sand.u32 %s62, 1
        %s272 = smul.addr %s271, 64
        %s273 = scalar_lea.vmem [#allocation3], %s272
        // Predicated region
        $region60: #{tpu_custom_call.1} parent=58 // pred_check
          %p274 = pneg %p75
        $region61: #{tpu_custom_call.1} parent=58 // pred_check_branch
          %276 = sbr.rel (%p274) target = $region63
        $region62: #{tpu_custom_call.1} parent=58 // pred_region
          _
        $region63: #{tpu_custom_call.1} parent=58 // pred_fallthru
          _
        %s277 = smul.u32 2, %s20
        %p278 = scmp.lt.s32.totalorder %s277, 7
        %s279 = scalar_select %p278, %s277, 7
        %s280 = smul.addr %s279, 8
        %s281 = scalar_lea.vmem %s0, %s280
        %p282 = pneg %p49
        %p283 = pneg %p46
        %s284 = sand.u32 %s62, 1
        %s285 = sand.u32 %s62, 1
        %s286 = smul.addr %s285, 64
        %s287 = scalar_lea.vmem [#allocation3], %s286
        %p288 = pneg %p75
        %p289 = pneg %p72
        %s290 = smul.u32 2, %s21
        %p291 = scmp.lt.s32.totalorder %s290, 3
        %s292 = scalar_select %p291, %s290, 3
        %s293 = scalar_lea.vmem %s2, %s292
        %p294 = pneg %p101
        %p295 = pneg %p98
        %s296 = smul.u32 16, %s21
        %p297 = scmp.lt.s32.totalorder %s296, 31
        %s298 = scalar_select %p297, %s296, 31
        %s299 = smul.addr %s298, 8
        %s300 = scalar_lea.vmem %s3, %s299
        %p301 = pneg %p127
        %p302 = pneg %p124
        %p303 = pneg %p148
        %p304 = pneg %p145
        %p305 = pneg %p174
        %p306 = pneg %p171
        %s307 = smul.u32 2, %s20
        %p308 = scmp.lt.s32.totalorder %s307, 7
        %s309 = scalar_select %p308, %s307, 7
        %s310 = smul.addr %s309, 8
        %s311 = scalar_lea.vmem %s5, %s310
        %s312 = smul.u32 2, %s20
        %p313 = scmp.lt.s32.totalorder %s312, 7
        %s314 = scalar_select %p313, %s312, 7
        %s315 = smul.addr %s314, 8
        %s316 = scalar_lea.vmem %s0, %s315
        %s317 = smul.u32 2, %s20
        %s318 = smul.u32 2, %s21
        %s319 = smul.u32 2, %s21
        %p320 = scmp.lt.s32.totalorder %s319, 3
        %s321 = scalar_select %p320, %s319, 3
        %s322 = scalar_lea.vmem %s2, %s321
        %s323 = smul.u32 2, %s21
        %s324 = smul.u32 16, %s21
        %p325 = scmp.lt.s32.totalorder %s324, 31
        %s326 = scalar_select %p325, %s324, 31
        %s327 = smul.addr %s326, 8
        %s328 = scalar_lea.vmem %s3, %s327
        %s329 = smul.u32 16, %s21
        %s330 = smul.u32 2, %s20
        %p331 = scmp.lt.s32.totalorder %s330, 7
        %s332 = scalar_select %p331, %s330, 7
        %s333 = smul.addr %s332, 8
        %s334 = scalar_lea.vmem %s5, %s333
        %s335 = smul.u32 2, %s20
        %p336 = scmp.eq.s32.totalorder %s21, 0
        // Predicated region
        $region64: #{tpu_custom_call.1} parent=58 // pred_check
          %p337 = pneg %p336
        $region65: #{tpu_custom_call.1} parent=58 // pred_check_branch
          %339 = sbr.rel (%p337) target = $region67
        $region66: #{tpu_custom_call.1} parent=58 // pred_region
          %vm340 = vcmask 261120
          %341 = vst.msk [vmem:[#allocation2] sm:$0xff] %vm340, 0.0
          %342 = vst.msk [vmem:[#allocation2 + $0x8] sm:$0xff] %vm340, 0.0
        $region67: #{tpu_custom_call.1} parent=58 // pred_fallthru
          _
        %v343 = vld [vmem:[%s316] sm:$0xff]
        %v344 = vld [vmem:[%s316 + $0x8] sm:$0xff]
        %v345 = vld [vmem:[%s273] sm:$0xff]
        %v346 = vld [vmem:[%s273 + $0x8] sm:$0xff]
        %v347 = vld [vmem:[%s273 + $0x10] sm:$0xff]
        %v348 = vld [vmem:[%s273 + $0x18] sm:$0xff]
        %v349 = vld [vmem:[%s273 + $0x20] sm:$0xff]
        %v350 = vld [vmem:[%s273 + $0x28] sm:$0xff]
        %v351 = vld [vmem:[%s273 + $0x30] sm:$0xff]
        %v352 = vld [vmem:[%s273 + $0x38] sm:$0xff]
        %v353 = vld [vmem:[%s322] sm:$0x3]
        %v355 = vperm.slane %v353, 0
        %v356 = vperm.slane %v353, 1
        %vm359 = vcmask 261120
        %v361 = vsel %vm359, %v343, 0
        %v364 = vsel %vm359, %v344, 0
        %366 = vmatpush.msra.mxu0 0.0
        %367 = vmatpush.msra.mxu0 0.0
        %368 = vmatpush.msra.mxu0 0.0
        %369 = vmatpush.msra.mxu0 0.0
        %370 = vmatpush.msra.mxu0 0.0
        %371 = vmatpush.msra.mxu0 0.0
        %372 = vmatpush.msra.mxu0 0.0
        %373 = vmatpush.msra.mxu0 0.0
        %374 = vmatpush.msra.mxu0 0.0
        %375 = vmatpush.msra.mxu0 0.0
        %376 = vmatpush.msra.mxu0 0.0
        %377 = vmatpush.msra.mxu0 0.0
        %378 = vmatpush.msra.mxu0 %v351
        %379 = vmatpush.msra.mxu0 %v349
        %380 = vmatpush.msra.mxu0 %v347
        %381 = vmatpush.msra.mxu0 %v345
        %382 = vmatmul.f32.gmra.mxu0 %v361
        %v383 = vpop.f32.mrf.mxu0
        %v384 = vadd.f32 %v355, %v383
        %385 = vmatmul.f32.gmra.mxu0 %v364
        %v386 = vpop.f32.mrf.mxu0
        %v387 = vadd.f32 %v355, %v386
        %388 = vdwg.mxu0
        %389 = vmatpush.msra.mxu0 0.0
        %390 = vmatpush.msra.mxu0 0.0
        %391 = vmatpush.msra.mxu0 0.0
        %392 = vmatpush.msra.mxu0 0.0
        %393 = vmatpush.msra.mxu0 0.0
        %394 = vmatpush.msra.mxu0 0.0
        %395 = vmatpush.msra.mxu0 0.0
        %396 = vmatpush.msra.mxu0 0.0
        %397 = vmatpush.msra.mxu0 0.0
        %398 = vmatpush.msra.mxu0 0.0
        %399 = vmatpush.msra.mxu0 0.0
        %400 = vmatpush.msra.mxu0 0.0
        %401 = vmatpush.msra.mxu0 %v352
        %402 = vmatpush.msra.mxu0 %v350
        %403 = vmatpush.msra.mxu0 %v348
        %404 = vmatpush.msra.mxu0 %v346
        %405 = vmatmul.f32.gmra.mxu0 %v361
        %v406 = vpop.f32.mrf.mxu0
        %v407 = vadd.f32 %v356, %v406
        %408 = vmatmul.f32.gmra.mxu0 %v364
        %v409 = vpop.f32.mrf.mxu0
        %v410 = vadd.f32 %v356, %v409
        %411 = vdwg.mxu0
        %v412 = vxor.u32 %v384, 2147483648
        %v413 = vxor.u32 %v387, 2147483648
        %v414 = vmul.f32 %v412, 1.442695
        %v415 = vpow.pop %v414
        %v416 = vmul.f32 %v413, 1.442695
        %v417 = vpow.pop %v416
        %v418 = vadd.f32 %v415, 1.0
        %v419 = vadd.f32 %v417, 1.0
        %v420 = vrcp.pop %v418
        %v421 = vmul.f32 %v418, %v420
        %v422 = vsub.f32 1.0, %v421
        %v423 = vmul.f32 %v420, %v422
        %v424 = vadd.f32 %v420, %v423
        %vm425 = vweird.f32 %v418
        %vm426 = vweird.f32 %v420
        %vm427 = vmor %vm425, %vm426
        %v428 = vsel %vm427, %v420, %v424
        %v429 = vand.u32 2147483647, %v418
        %vm430 = vcmp.eq.f32.partialorder %v429, 8.507059e+37
        %v431 = vand.u32 %v418, 2147483648
        %v432 = vor.u32 1.1754944e-38, %v431
        %v433 = vsel %vm430, %v432, %v428
        %v434 = vmul.f32 1.0, %v433
        %v435 = vrcp.pop %v419
        %v436 = vmul.f32 %v419, %v435
        %v437 = vsub.f32 1.0, %v436
        %v438 = vmul.f32 %v435, %v437
        %v439 = vadd.f32 %v435, %v438
        %vm440 = vweird.f32 %v419
        %vm441 = vweird.f32 %v435
        %vm442 = vmor %vm440, %vm441
        %v443 = vsel %vm442, %v435, %v439
        %v444 = vand.u32 2147483647, %v419
        %vm445 = vcmp.eq.f32.partialorder %v444, 8.507059e+37
        %v446 = vand.u32 %v419, 2147483648
        %v447 = vor.u32 1.1754944e-38, %v446
        %v448 = vsel %vm445, %v447, %v443
        %v449 = vmul.f32 1.0, %v448
        %v450 = vmul.f32 %v384, %v434
        %v451 = vmul.f32 %v387, %v449
        %v452 = vmul.f32 %v450, %v407
        %v453 = vmul.f32 %v451, %v410
        %v454 = vld [vmem:[#allocation2] sm:$0xff]
        %v455 = vld [vmem:[#allocation2 + $0x8] sm:$0xff]
        %v456 = vld [vmem:[%s328] sm:$0xff]
        %v457 = vld [vmem:[%s328 + $0x8] sm:$0xff]
        %v458 = vld [vmem:[%s328 + $0x10] sm:$0xff]
        %v459 = vld [vmem:[%s328 + $0x18] sm:$0xff]
        %v460 = vld [vmem:[%s328 + $0x20] sm:$0xff]
        %v461 = vld [vmem:[%s328 + $0x28] sm:$0xff]
        %v462 = vld [vmem:[%s328 + $0x30] sm:$0xff]
        %v463 = vld [vmem:[%s328 + $0x38] sm:$0xff]
        %v464 = vld [vmem:[%s328 + $0x40] sm:$0xff]
        %v465 = vld [vmem:[%s328 + $0x48] sm:$0xff]
        %v466 = vld [vmem:[%s328 + $0x50] sm:$0xff]
        %v467 = vld [vmem:[%s328 + $0x58] sm:$0xff]
        %v468 = vld [vmem:[%s328 + $0x60] sm:$0xff]
        %v469 = vld [vmem:[%s328 + $0x68] sm:$0xff]
        %v470 = vld [vmem:[%s328 + $0x70] sm:$0xff]
        %v471 = vld [vmem:[%s328 + $0x78] sm:$0xff]
        %472 = vmatpush.msra.mxu0 %v471
        %473 = vmatpush.msra.mxu0 %v470
        %474 = vmatpush.msra.mxu0 %v469
        %475 = vmatpush.msra.mxu0 %v468
        %476 = vmatpush.msra.mxu0 %v467
        %477 = vmatpush.msra.mxu0 %v466
        %478 = vmatpush.msra.mxu0 %v465
        %479 = vmatpush.msra.mxu0 %v464
        %480 = vmatpush.msra.mxu0 %v463
        %481 = vmatpush.msra.mxu0 %v462
        %482 = vmatpush.msra.mxu0 %v461
        %483 = vmatpush.msra.mxu0 %v460
        %484 = vmatpush.msra.mxu0 %v459
        %485 = vmatpush.msra.mxu0 %v458
        %486 = vmatpush.msra.mxu0 %v457
        %487 = vmatpush.msra.mxu0 %v456
        %488 = vmatmul.f32.gmra.mxu0 %v452
        %v489 = vpop.f32.mrf.mxu0
        %v490 = vadd.f32 0.0, %v489
        %491 = vmatmul.f32.gmra.mxu0 %v453
        %v492 = vpop.f32.mrf.mxu0
        %v493 = vadd.f32 0.0, %v492
        %494 = vdwg.mxu0
        %v495 = vadd.f32 %v454, %v490
        %v496 = vadd.f32 %v455, %v493
        %497 = vst.msk [vmem:[#allocation2] sm:$0xff] %vm359, %v495
        %498 = vst.msk [vmem:[#allocation2 + $0x8] sm:$0xff] %vm359, %v496
        %p499 = scmp.eq.s32.totalorder %s21, 1
        // Predicated region
        $region68: #{tpu_custom_call.1} parent=58 // pred_check
          %p500 = pneg %p499
        $region69: #{tpu_custom_call.1} parent=58 // pred_check_branch
          %502 = sbr.rel (%p500) target = $region71
        $region70: #{tpu_custom_call.1} parent=58 // pred_region
          %v503 = vld [vmem:[#allocation2] sm:$0xff]
          %v504 = vld [vmem:[#allocation2 + $0x8] sm:$0xff]
          %v505 = vld [vmem:[%s4] sm:$0x1]
          %v507 = vperm.slane %v505, 0
          %v509 = vadd.f32 %v503, %v507
          %v510 = vadd.f32 %v504, %v507
          %511 = vst.msk [vmem:[%s334] sm:$0xff] %vm359, %v509
          %512 = vst.msk [vmem:[%s334 + $0x8] sm:$0xff] %vm359, %v510
        $region71: #{tpu_custom_call.1} parent=58 // pred_fallthru
          _
        %s513 = smul.u32 2, %s20
        %p514 = scmp.lt.s32.totalorder %s513, 7
        %s515 = scalar_select %p514, %s513, 7
        %s516 = smul.addr %s515, 8
        %s517 = scalar_lea.vmem %s5, %s516
        // Predicated region
        $region72: #{tpu_custom_call.1} parent=58 // pred_check
          %p518 = pneg %p171
        $region73: #{tpu_custom_call.1} parent=58 // pred_check_branch
          %520 = sbr.rel (%p518) target = $region75
        $region74: #{tpu_custom_call.1} parent=58 // pred_region
          %s521 = smul.u32 2, %s20
        $region75: #{tpu_custom_call.1} parent=58 // pred_fallthru
          _
      $region59: #{tpu_custom_call.1} parent=5 // pred_fallthru
        _
      %p522 = scmp.le.s32.totalorder 2, %s11
      // Predicated region
      $region76: #{tpu_custom_call.1} parent=5 // pred_check
        %p523 = pneg %p522
      $region77: #{tpu_custom_call.1} parent=5 // pred_check_branch
        %525 = sbr.rel (%p523) target = $region79
      $region78: #{tpu_custom_call.1} parent=5 // pred_region
        %s526 = ssub.s32 %s11, 2
        // Predicated region
        $region80: #{tpu_custom_call.1} parent=78 // pred_check
          %p527 = pneg %p177
        $region81: #{tpu_custom_call.1} parent=78 // pred_check_branch
          %529 = sbr.rel (%p527) target = $region83
        $region82: #{tpu_custom_call.1} parent=78 // pred_region
          %s530 = smul.u32 2, %s22
          %p531 = scmp.lt.s32.totalorder %s530, 7
          %s532 = scalar_select %p531, %s530, 7
          %s533 = smul.addr %s532, 8
          %s534 = scalar_lea.vmem %s5, %s533
        $region83: #{tpu_custom_call.1} parent=78 // pred_fallthru
          _
      $region79: #{tpu_custom_call.1} parent=5 // pred_fallthru
        _
    $region6: #{tpu_custom_call.1} parent=1 // loop_footer
      %s15 = sadd.s32 1, %s11
    $region7: #{tpu_custom_call.1} parent=1 // loop_footer_branch
      %10 = sbr.rel target = $region3
    $region8: #{tpu_custom_call.1} parent=1 // loop_exit
      _

</llo_original>
